<compile_context>
chip_gen: v7x
topology: tpu7x:2x2x1
jax: 0.10.0
libtpu: 0.0.40
codegen_flags: <defaults>
</compile_context>

<pallas_src>
import jax
import jax.numpy as jnp
from jax import lax
from jax.experimental import pallas as pl
from jax.experimental.pallas import tpu as pltpu


_SUB = 8      # f32 sublane multiple
_LANE = 128   # lane multiple
_EPS = 1e-12  # L2-norm guard


def _round_up(n, m):
    return -(-n // m) * m


def _pad_cast(x, rows, cols, dtype=jnp.bfloat16):
    r, c = x.shape
    return jnp.pad(x.astype(jnp.float32),
                   ((0, rows - r), (0, cols - c))).astype(dtype)


# ----------------------------------------------------------------------------
# Fused Pallas kernel: encoders + COOP head (one batch tile per grid step)
# ----------------------------------------------------------------------------
def _coop_fused_kernel(scale_ref, xp_ref, wp_ref, wv_ref, wtt_ref, tpt_ref, o_ref):
    """Fused COOP forward on padded, lane-dense bf16 blocks.

    scale_ref : SMEM f32[1]      exp(logit_scale), precomputed in the wrapper
    xp_ref    : [bm,  CPPp] bf16  patch-mean-pooled image pixels (batch tile)
    wp_ref    : [CPPp, Dvp] bf16  patch-embed weight
    wv_ref    : [Dvp,  Dp ] bf16  visual projection
    wtt_ref   : [Dp,  Dtp ] bf16  text projection, transposed
    tpt_ref   : [Dtp,  Cp ] bf16  token-mean-pooled prompts, transposed
    o_ref     : [bm,   Cp ] f32   scaled cosine logits
    """
    # --- stand-in linear encoders: bf16 MXU inputs, f32 accumulation --------
    vis = jnp.dot(xp_ref[...], wp_ref[...], preferred_element_type=jnp.float32)
    img = jnp.dot(vis.astype(jnp.bfloat16), wv_ref[...],
                  preferred_element_type=jnp.float32)                 # [bm, Dp]
    # Text branch already transposed: [Dp, Cp] so the final logits matmul is
    # a plain sublane-K MXU dot (no XLU transpose of the text features).
    txt_t = jnp.dot(wtt_ref[...], tpt_ref[...],
                    preferred_element_type=jnp.float32)               # [Dp, Cp]

    # --- eps-guarded L2 normalization in f32 --------------------------------
    # exp(logit_scale) is an SMEM scalar, folded into the [bm,1] image rsqrt
    # factor: one scalar VPU multiply instead of a [bm,Cp] exp/broadcast.
    inv_img = lax.rsqrt(jnp.sum(img * img, axis=-1, keepdims=True) + _EPS)
    img_n = img * (inv_img * scale_ref[0])                            # [bm, Dp]
    inv_txt = lax.rsqrt(jnp.sum(txt_t * txt_t, axis=0, keepdims=True) + _EPS)
    txt_tn = txt_t * inv_txt                                          # [Dp, Cp]

    # --- scaled cosine logits on the MXU (bf16 in, f32 out) -----------------
    o_ref[...] = jnp.dot(img_n.astype(jnp.bfloat16),
                         txt_tn.astype(jnp.bfloat16),
                         preferred_element_type=jnp.float32)


# ----------------------------------------------------------------------------
# One-time weight preparation (hoisted out of the per-call path)
# ----------------------------------------------------------------------------
def prepare_coop_params(params):
    """Pad + cast the frozen CLIP weights to bf16 ONCE; also pre-exp the
    logit scale. Only the learnable-prompt / image pooling stays per-call."""
    w_patch = params["w_patch"]        # [C*P*P, D_vis]
    w_vis_proj = params["w_vis_proj"]  # [D_vis, D]
    w_txt_proj = params["w_txt_proj"]  # [D_txt, D]

    cpp, d_vis = w_patch.shape
    d = w_vis_proj.shape[1]
    d_txt = w_txt_proj.shape[0]
    assert w_vis_proj.shape[0] == d_vis
    assert w_txt_proj.shape == (d_txt, d)

    cppp = _round_up(cpp, _LANE)
    dvp = _round_up(d_vis, _LANE)
    dtp = _round_up(d_txt, _LANE)
    dp = _round_up(d, _LANE)

    return {
        "wp": _pad_cast(w_patch, cppp, dvp),           # [CPPp, Dvp] bf16
        "wv": _pad_cast(w_vis_proj, dvp, dp),          # [Dvp,  Dp ] bf16
        "wtt": _pad_cast(w_txt_proj.T, dp, dtp),       # [Dp,  Dtp ] bf16
        "scale_exp": jnp.reshape(
            jnp.exp(params["logit_scale"].astype(jnp.float32)), (1,)),
        "dims": (cpp, d_vis, d_txt, d, cppp, dvp, dtp, dp),
    }


# ----------------------------------------------------------------------------
# pallas_call wrapper
# ----------------------------------------------------------------------------
def pallas_coop_fused(x_pool, txt_pool, prep):
    B = x_pool.shape[0]
    n_cls = txt_pool.shape[0]
    cpp, d_vis, d_txt, d, cppp, dvp, dtp, dp = prep["dims"]
    assert x_pool.shape[1] == cpp
    assert txt_pool.shape[1] == d_txt

    # Batch tiling: rows are a "parallel" grid axis (v7x megacore); at toy
    # sizes this degenerates to a single (bp, .) block and grid=(1,).
    bp0 = _round_up(B, _SUB)
    bm = min(bp0, 128)
    bp = _round_up(bp0, bm)
    # n_cls is the logits lane axis: pad to 128 so stores are full (8,128)
    # unmasked tiles.
    cp = _round_up(n_cls, _LANE)

    xp = _pad_cast(x_pool, bp, cppp)          # per-call (depends on the image)
    tpt = _pad_cast(txt_pool.T, dtp, cp)      # per-call (ctx is learnable)
    wp, wv, wtt, scale = prep["wp"], prep["wv"], prep["wtt"], prep["scale_exp"]

    # Explicit scoped-VMEM budget: blocks (double-buffered) + headroom,
    # clamped well under v7x's 64 MiB physical VMEM.
    block_bytes = 2 * (bm * cppp + cppp * dvp + dvp * dp + dp * dtp + dtp * cp) \
        + 4 * bm * cp
    vmem_bytes = int(min(max(2 * block_bytes + (2 << 20), 16 << 20), 48 << 20))

    out = pl.pallas_call(
        _coop_fused_kernel,
        out_shape=jax.ShapeDtypeStruct((bp, cp), jnp.float32),
        grid=(bp // bm,),
        in_specs=[
            pl.BlockSpec(memory_space=pltpu.MemorySpace.SMEM),   # exp(logit_scale)
            pl.BlockSpec((bm, cppp), lambda i: (i, 0)),          # image tile
            pl.BlockSpec((cppp, dvp), lambda i: (0, 0)),         # weights: same
            pl.BlockSpec((dvp, dp), lambda i: (0, 0)),           # block every step
            pl.BlockSpec((dp, dtp), lambda i: (0, 0)),
            pl.BlockSpec((dtp, cp), lambda i: (0, 0)),
        ],
        out_specs=pl.BlockSpec((bm, cp), lambda i: (i, 0)),
        compiler_params=pltpu.CompilerParams(
            dimension_semantics=("parallel",),
            vmem_limit_bytes=vmem_bytes),
    )(scale, xp, wp, wv, wtt, tpt)
    return out[:B, :n_cls]


# ----------------------------------------------------------------------------
# COOP forward (thin JAX glue, hot path in the fused Pallas kernel)
# ----------------------------------------------------------------------------
def coop_forward(image, params, prep=None):
    if prep is None:
        prep = prepare_coop_params(params)
    P = params["patch_size"]
    ctx = params["ctx"]                # [n_ctx, D_txt]   learnable prompt ctx
    cls_emb = params["cls_emb"]        # [n_cls, n_name, D_txt]

    B, C, H, W = image.shape
    nH, nW = H // P, W // P

    # Patchify + mean over the nH*nW patches. The stand-in image encoder is
    # linear, so pooling first is exact and cuts MXU work by N.
    x = image.reshape(B, C, nH, P, nW, P)
    x_pool = x.mean(axis=(2, 4)).reshape(B, C * P * P)      # (C, p1, p2) order

    # Prompt learner: prompts = concat([ctx broadcast], cls_emb) over tokens;
    # mean over tokens commutes with the linear text projection.
    n_ctx = ctx.shape[0]
    n_name = cls_emb.shape[1]
    tokens = n_ctx + n_name
    txt_pool = (jnp.sum(ctx, axis=0)[None, :] + jnp.sum(cls_emb, axis=1)) / tokens

    return pallas_coop_fused(x_pool, txt_pool, prep)


def coop_reference(image, params):
    """Pure-JAX f32 reference mirroring the original, un-fused order."""
    w_patch = params["w_patch"]
    w_vis_proj = params["w_vis_proj"]
    ctx = params["ctx"]
    cls_emb = params["cls_emb"]
    w_txt_proj = params["w_txt_proj"]
    logit_scale = params["logit_scale"]
    P = params["patch_size"]

    B, C, H, W = image.shape
    nH, nW = H // P, W // P
    N = nH * nW

    x = image.reshape(B, C, nH, P, nW, P)
    x = x.transpose(0, 2, 4, 1, 3, 5).reshape(B * N, C * P * P)
    patches = x @ w_patch
    image_features = patches.reshape(B, N, -1).mean(axis=1) @ w_vis_proj

    n_cls = cls_emb.shape[0]
    prompts = jnp.concatenate(
        [jnp.broadcast_to(ctx[None], (n_cls,) + ctx.shape), cls_emb], axis=1)
    text_features = prompts.mean(axis=1) @ w_txt_proj

    img_n = image_features / jnp.linalg.norm(image_features, axis=-1, keepdims=True)
    txt_n = text_features / jnp.linalg.norm(text_features, axis=-1, keepdims=True)
    return jnp.exp(logit_scale) * img_n @ txt_n.T


if __name__ == "__main__":
    key = jax.random.PRNGKey(0)

    # Small synthetic shapes consistent with the COOP forward pass.
    B, C_img, H, W = 2, 3, 16, 16
    P = 4                       # patch size -> 16 patches
    patch_dim = C_img * P * P   # 48
    D_vis = 32                  # visual width
    D_txt = 32                  # text width
    D = 32                      # joint embedding dim
    n_cls = 4                   # number of classnames
    n_ctx = 4                   # learnable context tokens
    n_name = 4                  # class-name tokens

    ks = jax.random.split(key, 7)
    image = jax.random.normal(ks[0], (B, C_img, H, W), jnp.float32)

    params = {
        "patch_size": P,
        "w_patch": 0.02 * jax.random.normal(ks[1], (patch_dim, D_vis), jnp.float32),
        "w_vis_proj": 0.02 * jax.random.normal(ks[2], (D_vis, D), jnp.float32),
        "ctx": 0.02 * jax.random.normal(ks[3], (n_ctx, D_txt), jnp.float32),
        "cls_emb": 0.02 * jax.random.normal(ks[4], (n_cls, n_name, D_txt), jnp.float32),
        "w_txt_proj": 0.02 * jax.random.normal(ks[5], (D_txt, D), jnp.float32),
        # CLIP init: logit_scale = log(1 / 0.07)
        "logit_scale": jnp.asarray(jnp.log(1.0 / 0.07), jnp.float32),
    }

    # Hoisted one-time weight pad/cast (per-forward path only pools + pads the
    # per-call inputs).
    prep = prepare_coop_params(params)
    jax.block_until_ready(jax.tree_util.tree_leaves(prep))

    logits = coop_forward(image, params, prep)
    jax.block_until_ready(logits)

    ref = coop_reference(image, params)
    assert logits.shape == (B, n_cls)
    assert bool(jnp.all(jnp.isfinite(logits)))
    # bf16 MXU operands vs the f32 reference -> looser tolerance than pure f32.
    assert bool(jnp.allclose(logits, ref, rtol=3e-2, atol=1.5e-1))
    print("KERNEL_OK")
</pallas_src>

<mosaic_0001>
module attributes {stable_mosaic.version = 11 : i64} {
  func.func @_coop_fused_kernel(%arg0: i32, %arg1: memref<1xf32, #tpu.memory_space<smem>>, %arg2: memref<8x128xbf16, #tpu.memory_space<vmem>>, %arg3: memref<128x128xbf16, #tpu.memory_space<vmem>>, %arg4: memref<128x128xbf16, #tpu.memory_space<vmem>>, %arg5: memref<128x128xbf16, #tpu.memory_space<vmem>>, %arg6: memref<128x128xbf16, #tpu.memory_space<vmem>>, %arg7: memref<8x128xf32, #tpu.memory_space<vmem>>) attributes {dimension_semantics = [#tpu.dimension_semantics<parallel>], iteration_bounds = array<i64: 1>, scalar_prefetch = 0 : i64, scratch_operands = 0 : i64, tpu.core_type = #tpu.core_type<tc>, window_params = [{transform_indices = @transform_0, window_bounds = array<i64: 1>}, {transform_indices = @transform_1, window_bounds = array<i64: 8, 128>}, {pipeline_mode = #tpu.pipeline_mode<synchronous>, transform_indices = @transform_2, window_bounds = array<i64: 128, 128>}, {pipeline_mode = #tpu.pipeline_mode<synchronous>, transform_indices = @transform_3, window_bounds = array<i64: 128, 128>}, {pipeline_mode = #tpu.pipeline_mode<synchronous>, transform_indices = @transform_4, window_bounds = array<i64: 128, 128>}, {pipeline_mode = #tpu.pipeline_mode<synchronous>, transform_indices = @transform_5, window_bounds = array<i64: 128, 128>}, {transform_indices = @transform_6, window_bounds = array<i64: 8, 128>}]} {
    %c0 = arith.constant 0 : index
    %c0_0 = arith.constant 0 : index
    %0 = vector.load %arg2[%c0, %c0_0] : memref<8x128xbf16, #tpu.memory_space<vmem>>, vector<8x128xbf16>
    %c0_1 = arith.constant 0 : index
    %c0_2 = arith.constant 0 : index
    %1 = vector.load %arg3[%c0_1, %c0_2] : memref<128x128xbf16, #tpu.memory_space<vmem>>, vector<128x128xbf16>
    %cst = arith.constant dense<0.000000e+00> : vector<8x128xf32>
    %2 = tpu.matmul %0, %1, %cst {dimension_numbers = #tpu.dot_dimension_numbers<[1], [0], [0], [1], [0, 0, 1, 1], [], []>} : vector<8x128xbf16>, vector<128x128xbf16>, vector<8x128xf32> -> vector<8x128xf32>
    %3 = arith.truncf %2 : vector<8x128xf32> to vector<8x128xbf16>
    %c0_3 = arith.constant 0 : index
    %c0_4 = arith.constant 0 : index
    %4 = vector.load %arg4[%c0_3, %c0_4] : memref<128x128xbf16, #tpu.memory_space<vmem>>, vector<128x128xbf16>
    %cst_5 = arith.constant dense<0.000000e+00> : vector<8x128xf32>
    %5 = tpu.matmul %3, %4, %cst_5 {dimension_numbers = #tpu.dot_dimension_numbers<[1], [0], [0], [1], [0, 0, 1, 1], [], []>} : vector<8x128xbf16>, vector<128x128xbf16>, vector<8x128xf32> -> vector<8x128xf32>
    %c0_6 = arith.constant 0 : index
    %c0_7 = arith.constant 0 : index
    %6 = vector.load %arg5[%c0_6, %c0_7] : memref<128x128xbf16, #tpu.memory_space<vmem>>, vector<128x128xbf16>
    %c0_8 = arith.constant 0 : index
    %c0_9 = arith.constant 0 : index
    %7 = vector.load %arg6[%c0_8, %c0_9] : memref<128x128xbf16, #tpu.memory_space<vmem>>, vector<128x128xbf16>
    %cst_10 = arith.constant dense<0.000000e+00> : vector<128x128xf32>
    %8 = tpu.matmul %6, %7, %cst_10 {dimension_numbers = #tpu.dot_dimension_numbers<[1], [0], [0], [1], [0, 0, 1, 1], [], []>} : vector<128x128xbf16>, vector<128x128xbf16>, vector<128x128xf32> -> vector<128x128xf32>
    %9 = arith.mulf %5, %5 : vector<8x128xf32>
    %cst_11 = arith.constant dense<0.000000e+00> : vector<8xf32>
    %10 = vector.multi_reduction <add>, %9, %cst_11 [1] : vector<8x128xf32> to vector<8xf32>
    %11 = vector.shape_cast %10 : vector<8xf32> to vector<8x1xf32>
    %cst_12 = arith.constant 9.99999996E-13 : f32
    %12 = vector.broadcast %cst_12 : f32 to vector<8x1xf32>
    %13 = arith.addf %11, %12 : vector<8x1xf32>
    %14 = math.rsqrt %13 : vector<8x1xf32>
    %c0_13 = arith.constant 0 : index
    %15 = memref.load %arg1[%c0_13] : memref<1xf32, #tpu.memory_space<smem>>
    %16 = vector.broadcast %15 : f32 to vector<8x1xf32>
    %17 = arith.mulf %14, %16 : vector<8x1xf32>
    %18 = vector.broadcast %17 : vector<8x1xf32> to vector<8x128xf32>
    %19 = arith.mulf %5, %18 : vector<8x128xf32>
    %20 = arith.mulf %8, %8 : vector<128x128xf32>
    %cst_14 = arith.constant dense<0.000000e+00> : vector<128xf32>
    %21 = vector.multi_reduction <add>, %20, %cst_14 [0] : vector<128x128xf32> to vector<128xf32>
    %22 = vector.shape_cast %21 : vector<128xf32> to vector<1x128xf32>
    %cst_15 = arith.constant 9.99999996E-13 : f32
    %23 = vector.broadcast %cst_15 : f32 to vector<1x128xf32>
    %24 = arith.addf %22, %23 : vector<1x128xf32>
    %25 = math.rsqrt %24 : vector<1x128xf32>
    %26 = vector.broadcast %25 : vector<1x128xf32> to vector<128x128xf32>
    %27 = arith.mulf %8, %26 : vector<128x128xf32>
    %28 = arith.truncf %19 : vector<8x128xf32> to vector<8x128xbf16>
    %29 = arith.truncf %27 : vector<128x128xf32> to vector<128x128xbf16>
    %cst_16 = arith.constant dense<0.000000e+00> : vector<8x128xf32>
    %30 = tpu.matmul %28, %29, %cst_16 {dimension_numbers = #tpu.dot_dimension_numbers<[1], [0], [0], [1], [0, 0, 1, 1], [], []>} : vector<8x128xbf16>, vector<128x128xbf16>, vector<8x128xf32> -> vector<8x128xf32>
    %c0_17 = arith.constant 0 : index
    %c0_18 = arith.constant 0 : index
    %31 = vector.load %arg7[%c0_17, %c0_18] : memref<8x128xf32, #tpu.memory_space<vmem>>, vector<8x128xf32>
    tpu.vector_store %arg7[%c0_17, %c0_18], %30 {strides = array<i32>} : memref<8x128xf32, #tpu.memory_space<vmem>>, vector<8x128xf32>,
    return
  }
  func.func @transform_0(%arg0: i32) -> i32 {
    %c0_i32 = arith.constant 0 : i32
    %c0_i32_0 = arith.constant 0 : i32
    return %c0_i32 : i32
  }
  func.func @transform_1(%arg0: i32) -> (i32, i32) {
    %c0_i32 = arith.constant 0 : i32
    %c0_i32_0 = arith.constant 0 : i32
    return %arg0, %c0_i32 : i32, i32
  }
  func.func @transform_2(%arg0: i32) -> (i32, i32) {
    %c0_i32 = arith.constant 0 : i32
    %c0_i32_0 = arith.constant 0 : i32
    %c0_i32_1 = arith.constant 0 : i32
    return %c0_i32, %c0_i32_0 : i32, i32
  }
  func.func @transform_3(%arg0: i32) -> (i32, i32) {
    %c0_i32 = arith.constant 0 : i32
    %c0_i32_0 = arith.constant 0 : i32
    %c0_i32_1 = arith.constant 0 : i32
    return %c0_i32, %c0_i32_0 : i32, i32
  }
  func.func @transform_4(%arg0: i32) -> (i32, i32) {
    %c0_i32 = arith.constant 0 : i32
    %c0_i32_0 = arith.constant 0 : i32
    %c0_i32_1 = arith.constant 0 : i32
    return %c0_i32, %c0_i32_0 : i32, i32
  }
  func.func @transform_5(%arg0: i32) -> (i32, i32) {
    %c0_i32 = arith.constant 0 : i32
    %c0_i32_0 = arith.constant 0 : i32
    %c0_i32_1 = arith.constant 0 : i32
    return %c0_i32, %c0_i32_0 : i32, i32
  }
  func.func @transform_6(%arg0: i32) -> (i32, i32) {
    %c0_i32 = arith.constant 0 : i32
    %c0_i32_0 = arith.constant 0 : i32
    return %arg0, %c0_i32 : i32, i32
  }
}

</mosaic_0001>

<llo_original>
// kernel: tpu_custom_call.1
$region0: #{tpu_custom_call.1}
  #allocation0 [shape = 'u32[]', space=smem, size = 0x4, offset = 0x4, fixed_abs, tag = 'smem constant byte address 0x4 - core index']
  #allocation1 [shape = 'u32[144,128]{1,0:T(1,128)}', space=vmem, size = 0x12000, scoped, tag = 'internal scratch']
  #allocation2 [shape = 'f32[1]{0:T(128)S(6)}', space=smem, size = 0x200, scoped, tag = 'scoped memory for tpu_custom_call.1']
  %s0 = inlined_call_operand.<no memory space> [shape: f32[1], index: 0, kind: input, shape index: {}]
  %s1 = inlined_call_operand.hbm [shape: bf16[8,128], index: 1, kind: input, shape index: {}]
  %s2 = inlined_call_operand.hbm [shape: bf16[128,128], index: 2, kind: input, shape index: {}]
  %s3 = inlined_call_operand.hbm [shape: bf16[128,128], index: 3, kind: input, shape index: {}]
  %s4 = inlined_call_operand.hbm [shape: bf16[128,128], index: 4, kind: input, shape index: {}]
  %s5 = inlined_call_operand.hbm [shape: bf16[128,128], index: 5, kind: input, shape index: {}]
  %s6 = inlined_call_operand.hbm [shape: f32[8,128], index: 6, kind: output, shape index: {}]
  %s7 = sld [smem:[#allocation0]]
  $region54: #{tpu_custom_call.1} parent=0
    _
  %s9 = ssub.s32 1, %s7
  %s10 = scalar_select 0, %s9, %s7
  %11 = sst [smem:[#allocation2]] %s0
  $region1: #{tpu_custom_call.1} parent=0
    #allocation3 [shape = 'u8[2048]{0}', space=vmem, size = 0x800, scoped, tag = 'input window, operand 1, single buffered']
    #allocation4 [shape = 's32[1]{0}', space=sflag, size = 0x4, scoped, tag = 'scoped memory for tpu_custom_call.1']
    #allocation5 [shape = 's32[1]{0}', space=sflag, size = 0x4, scoped, tag = 'scoped memory for tpu_custom_call.1']
    #allocation6 [shape = 'u8[32768]{0}', space=vmem, size = 0x8000, scoped, tag = 'input window, operand 2, single buffered']
    #allocation7 [shape = 's32[1]{0}', space=sflag, size = 0x4, scoped, tag = 'scoped memory for tpu_custom_call.1']
    #allocation8 [shape = 'u8[32768]{0}', space=vmem, size = 0x8000, scoped, tag = 'input window, operand 3, single buffered']
    #allocation9 [shape = 'u8[32768]{0}', space=vmem, size = 0x8000, scoped, tag = 'input window, operand 4, single buffered']
    #allocation10 [shape = 's32[1]{0}', space=sflag, size = 0x4, scoped, tag = 'scoped memory for tpu_custom_call.1']
    #allocation11 [shape = 'u8[32768]{0}', space=vmem, size = 0x8000, scoped, tag = 'input window, operand 5, single buffered']
    #allocation12 [shape = 'u8[4096]{0}', space=vmem, size = 0x1000, scoped, tag = 'output window, operand 0, single buffered']
    %12 = vsyncpa [#allocation4], 0
    %13 = vsyncpa [#allocation7], 0
    %14 = vsyncpa [#allocation10], 0
    %15 = vsyncpa [#allocation5], 0
    // Predicated region
    $region2: #{tpu_custom_call.1} parent=1 // pred_check
      _
    $region3: #{tpu_custom_call.1} parent=1 // pred_check_branch
      %17 = sbr.rel (0) target = $region5
    $region4: #{tpu_custom_call.1} parent=1 // pred_region
      _
    $region5: #{tpu_custom_call.1} parent=1 // pred_fallthru
      _
    // Predicated region
    $region6: #{tpu_custom_call.1} parent=1 // pred_check
      _
    $region7: #{tpu_custom_call.1} parent=1 // pred_check_branch
      %19 = sbr.rel (0) target = $region9
    $region8: #{tpu_custom_call.1} parent=1 // pred_region
      %s21 = ssub.s32 64, 64
      %22 = vsyncadd [#allocation4], %s21
      %s24 = sshll.u32 [#allocation3], 4
      %s25 = int_to_ptr.vmem [resolvable:$true] %s24
      %27 = dma.hbm_to_vmem [thread:$0]  %s1, 64, %s25, [#allocation4]
    $region9: #{tpu_custom_call.1} parent=1 // pred_fallthru
      _
    // Predicated region
    $region10: #{tpu_custom_call.1} parent=1 // pred_check
      _
    $region11: #{tpu_custom_call.1} parent=1 // pred_check_branch
      %29 = sbr.rel (0) target = $region13
    $region12: #{tpu_custom_call.1} parent=1 // pred_region
      %s31 = ssub.s32 1024, 1024
      %32 = vsyncadd [#allocation7], %s31
      %s33 = sshll.u32 [#allocation6], 4
      %s34 = int_to_ptr.vmem [resolvable:$true] %s33
      %39 = dma.hbm_to_vmem [thread:$0]  %s2, 1024, %s34, [#allocation7], 64, 64, 4
    $region13: #{tpu_custom_call.1} parent=1 // pred_fallthru
      _
    // Predicated region
    $region14: #{tpu_custom_call.1} parent=1 // pred_check
      _
    $region15: #{tpu_custom_call.1} parent=1 // pred_check_branch
      %41 = sbr.rel (0) target = $region17
    $region16: #{tpu_custom_call.1} parent=1 // pred_region
      %s43 = ssub.s32 1024, 1024
      %44 = vsyncadd [#allocation7], %s43
      %s45 = sshll.u32 [#allocation8], 4
      %s46 = int_to_ptr.vmem [resolvable:$true] %s45
      %51 = dma.hbm_to_vmem [thread:$0]  %s3, 1024, %s46, [#allocation7], 64, 64, 4
    $region17: #{tpu_custom_call.1} parent=1 // pred_fallthru
      _
    // Predicated region
    $region18: #{tpu_custom_call.1} parent=1 // pred_check
      _
    $region19: #{tpu_custom_call.1} parent=1 // pred_check_branch
      %53 = sbr.rel (0) target = $region21
    $region20: #{tpu_custom_call.1} parent=1 // pred_region
      %s55 = ssub.s32 1024, 1024
      %56 = vsyncadd [#allocation10], %s55
      %s57 = sshll.u32 [#allocation9], 4
      %s58 = int_to_ptr.vmem [resolvable:$true] %s57
      %63 = dma.hbm_to_vmem [thread:$0]  %s4, 1024, %s58, [#allocation10], 64, 64, 4
    $region21: #{tpu_custom_call.1} parent=1 // pred_fallthru
      _
    // Predicated region
    $region22: #{tpu_custom_call.1} parent=1 // pred_check
      _
    $region23: #{tpu_custom_call.1} parent=1 // pred_check_branch
      %65 = sbr.rel (0) target = $region25
    $region24: #{tpu_custom_call.1} parent=1 // pred_region
      %s67 = ssub.s32 1024, 1024
      %68 = vsyncadd [#allocation10], %s67
      %s69 = sshll.u32 [#allocation11], 4
      %s70 = int_to_ptr.vmem [resolvable:$true] %s69
      %75 = dma.hbm_to_vmem [thread:$0]  %s5, 1024, %s70, [#allocation10], 64, 64, 4
    $region25: #{tpu_custom_call.1} parent=1 // pred_fallthru
      _
    // Predicated region
    $region26: #{tpu_custom_call.1} parent=1 // pred_check
      _
    $region27: #{tpu_custom_call.1} parent=1 // pred_check_branch
      %77 = sbr.rel (0) target = $region29
    $region28: #{tpu_custom_call.1} parent=1 // pred_region
      %78 = dma.done [#allocation4], 64
    $region29: #{tpu_custom_call.1} parent=1 // pred_fallthru
      _
    // Predicated region
    $region30: #{tpu_custom_call.1} parent=1 // pred_check
      _
    $region31: #{tpu_custom_call.1} parent=1 // pred_check_branch
      %80 = sbr.rel (0) target = $region33
    $region32: #{tpu_custom_call.1} parent=1 // pred_region
      %81 = dma.done [#allocation7], 1024
    $region33: #{tpu_custom_call.1} parent=1 // pred_fallthru
      _
    // Predicated region
    $region34: #{tpu_custom_call.1} parent=1 // pred_check
      _
    $region35: #{tpu_custom_call.1} parent=1 // pred_check_branch
      %83 = sbr.rel (0) target = $region37
    $region36: #{tpu_custom_call.1} parent=1 // pred_region
      %84 = dma.done [#allocation7], 1024
    $region37: #{tpu_custom_call.1} parent=1 // pred_fallthru
      _
    // Predicated region
    $region38: #{tpu_custom_call.1} parent=1 // pred_check
      _
    $region39: #{tpu_custom_call.1} parent=1 // pred_check_branch
      %86 = sbr.rel (0) target = $region41
    $region40: #{tpu_custom_call.1} parent=1 // pred_region
      %87 = dma.done [#allocation10], 1024
    $region41: #{tpu_custom_call.1} parent=1 // pred_fallthru
      _
    // Predicated region
    $region42: #{tpu_custom_call.1} parent=1 // pred_check
      _
    $region43: #{tpu_custom_call.1} parent=1 // pred_check_branch
      %89 = sbr.rel (0) target = $region45
    $region44: #{tpu_custom_call.1} parent=1 // pred_region
      %90 = dma.done [#allocation10], 1024
    $region45: #{tpu_custom_call.1} parent=1 // pred_fallthru
      _
    %v92 = vld [vmem:[#allocation3] sm:$0xf]
    %v93 = vld [vmem:[#allocation6] sm:$0xf]
    %v94 = vld [vmem:[#allocation6 + $0x4] sm:$0xf]
    %v95 = vld [vmem:[#allocation6 + $0x8] sm:$0xf]
    %v96 = vld [vmem:[#allocation6 + $0xc] sm:$0xf]
    %v97 = vld [vmem:[#allocation6 + $0x10] sm:$0xf]
    %v98 = vld [vmem:[#allocation6 + $0x14] sm:$0xf]
    %v99 = vld [vmem:[#allocation6 + $0x18] sm:$0xf]
    %v100 = vld [vmem:[#allocation6 + $0x1c] sm:$0xf]
    %v101 = vld [vmem:[#allocation6 + $0x20] sm:$0xf]
    %v102 = vld [vmem:[#allocation6 + $0x24] sm:$0xf]
    %v103 = vld [vmem:[#allocation6 + $0x28] sm:$0xf]
    %v104 = vld [vmem:[#allocation6 + $0x2c] sm:$0xf]
    %v105 = vld [vmem:[#allocation6 + $0x30] sm:$0xf]
    %v106 = vld [vmem:[#allocation6 + $0x34] sm:$0xf]
    %v107 = vld [vmem:[#allocation6 + $0x38] sm:$0xf]
    %v108 = vld [vmem:[#allocation6 + $0x3c] sm:$0xf]
    %v125 = vunpack.c.l.b16 %v93
    %v126 = vunpack.c.l.b16 %v94
    %v127 = vunpack.c.l.b16 %v95
    %v128 = vunpack.c.l.b16 %v96
    %v129 = vunpack.c.l.b16 %v97
    %v130 = vunpack.c.l.b16 %v98
    %v131 = vunpack.c.l.b16 %v99
    %v132 = vunpack.c.l.b16 %v100
    %v133 = vunpack.c.l.b16 %v101
    %v134 = vunpack.c.l.b16 %v102
    %v135 = vunpack.c.l.b16 %v103
    %v136 = vunpack.c.l.b16 %v104
    %v137 = vunpack.c.l.b16 %v105
    %v138 = vunpack.c.l.b16 %v106
    %v139 = vunpack.c.l.b16 %v107
    %v140 = vunpack.c.l.b16 %v108
    %v141 = vpack.c.b16 %v126, %v125
    %v142 = vpack.c.b16 %v128, %v127
    %v143 = vpack.c.b16 %v130, %v129
    %v144 = vpack.c.b16 %v132, %v131
    %v145 = vpack.c.b16 %v134, %v133
    %v146 = vpack.c.b16 %v136, %v135
    %v147 = vpack.c.b16 %v138, %v137
    %v148 = vpack.c.b16 %v140, %v139
    %157 = vmatprep.subr.bf16.mxu0 0
    %158 = vmatpush1.bf16.msra.mxu0 %v141
    %159 = vmatprep.subr.bf16.mxu0 0
    %160 = vmatpush1.bf16.msra.mxu0 %v142
    %161 = vmatprep.subr.bf16.mxu0 0
    %162 = vmatpush1.bf16.msra.mxu0 %v143
    %163 = vmatprep.subr.bf16.mxu0 0
    %164 = vmatpush1.bf16.msra.mxu0 %v144
    %165 = vmatprep.subr.bf16.mxu0 0
    %166 = vmatpush1.bf16.msra.mxu0 %v145
    %167 = vmatprep.subr.bf16.mxu0 0
    %168 = vmatpush1.bf16.msra.mxu0 %v146
    %169 = vmatprep.subr.bf16.mxu0 0
    %170 = vmatpush1.bf16.msra.mxu0 %v147
    %171 = vmatprep.subr.bf16.mxu0 0
    %172 = vmatpush1.bf16.msra.mxu0 %v148
    %173 = vmatprep.subr.bf16.mxu0 0
    %174 = vmatpush1.bf16.msra.mxu0 0
    %175 = vmatprep.subr.bf16.mxu0 0
    %176 = vmatpush1.bf16.msra.mxu0 0
    %177 = vmatprep.subr.bf16.mxu0 0
    %178 = vmatpush1.bf16.msra.mxu0 0
    %179 = vmatprep.subr.bf16.mxu0 0
    %180 = vmatpush1.bf16.msra.mxu0 0
    %181 = vmatprep.subr.bf16.mxu0 0
    %182 = vmatpush1.bf16.msra.mxu0 0
    %183 = vmatprep.subr.bf16.mxu0 0
    %184 = vmatpush1.bf16.msra.mxu0 0
    %185 = vmatprep.subr.bf16.mxu0 0
    %186 = vmatpush1.bf16.msra.mxu0 0
    %187 = vmatprep.subr.bf16.mxu0 0
    %188 = vmatpush1.bf16.msra.mxu0 0
    %189 = vmatprep.mubr.bf16.mxu0 0
    %190 = vmatmul.mubr.bf16.gmra.mrb[0].mxu0 %v92
    %v191 = vpop.f32.mrb[0].mxu0
    %v192 = vadd.f32 0.0, %v191
    %v193 = vpop.f32.mrb[0].mxu0
    %v194 = vpop.f32.mrb[0].mxu0
    %v195 = vpop.f32.mrb[0].mxu0
    %196 = vdwg.mxu0
    %v197 = vpack.c.bf16 %v192, %v192
    %v198 = vld [vmem:[#allocation8] sm:$0xf]
    %v199 = vld [vmem:[#allocation8 + $0x4] sm:$0xf]
    %v200 = vld [vmem:[#allocation8 + $0x8] sm:$0xf]
    %v201 = vld [vmem:[#allocation8 + $0xc] sm:$0xf]
    %v202 = vld [vmem:[#allocation8 + $0x10] sm:$0xf]
    %v203 = vld [vmem:[#allocation8 + $0x14] sm:$0xf]
    %v204 = vld [vmem:[#allocation8 + $0x18] sm:$0xf]
    %v205 = vld [vmem:[#allocation8 + $0x1c] sm:$0xf]
    %v206 = vld [vmem:[#allocation8 + $0x20] sm:$0xf]
    %v207 = vld [vmem:[#allocation8 + $0x24] sm:$0xf]
    %v208 = vld [vmem:[#allocation8 + $0x28] sm:$0xf]
    %v209 = vld [vmem:[#allocation8 + $0x2c] sm:$0xf]
    %v210 = vld [vmem:[#allocation8 + $0x30] sm:$0xf]
    %v211 = vld [vmem:[#allocation8 + $0x34] sm:$0xf]
    %v212 = vld [vmem:[#allocation8 + $0x38] sm:$0xf]
    %v213 = vld [vmem:[#allocation8 + $0x3c] sm:$0xf]
    %v230 = vunpack.c.l.b16 %v198
    %v231 = vunpack.c.l.b16 %v199
    %v232 = vunpack.c.l.b16 %v200
    %v233 = vunpack.c.l.b16 %v201
    %v234 = vunpack.c.l.b16 %v202
    %v235 = vunpack.c.l.b16 %v203
    %v236 = vunpack.c.l.b16 %v204
    %v237 = vunpack.c.l.b16 %v205
    %v238 = vunpack.c.l.b16 %v206
    %v239 = vunpack.c.l.b16 %v207
    %v240 = vunpack.c.l.b16 %v208
    %v241 = vunpack.c.l.b16 %v209
    %v242 = vunpack.c.l.b16 %v210
    %v243 = vunpack.c.l.b16 %v211
    %v244 = vunpack.c.l.b16 %v212
    %v245 = vunpack.c.l.b16 %v213
    %v246 = vpack.c.b16 %v231, %v230
    %v247 = vpack.c.b16 %v233, %v232
    %v248 = vpack.c.b16 %v235, %v234
    %v249 = vpack.c.b16 %v237, %v236
    %v250 = vpack.c.b16 %v239, %v238
    %v251 = vpack.c.b16 %v241, %v240
    %v252 = vpack.c.b16 %v243, %v242
    %v253 = vpack.c.b16 %v245, %v244
    %262 = vmatprep.subr.bf16.mxu0 0
    %263 = vmatpush1.bf16.msra.mxu0 %v246
    %264 = vmatprep.subr.bf16.mxu0 0
    %265 = vmatpush1.bf16.msra.mxu0 %v247
    %266 = vmatprep.subr.bf16.mxu0 0
    %267 = vmatpush1.bf16.msra.mxu0 %v248
    %268 = vmatprep.subr.bf16.mxu0 0
    %269 = vmatpush1.bf16.msra.mxu0 %v249
    %270 = vmatprep.subr.bf16.mxu0 0
    %271 = vmatpush1.bf16.msra.mxu0 %v250
    %272 = vmatprep.subr.bf16.mxu0 0
    %273 = vmatpush1.bf16.msra.mxu0 %v251
    %274 = vmatprep.subr.bf16.mxu0 0
    %275 = vmatpush1.bf16.msra.mxu0 %v252
    %276 = vmatprep.subr.bf16.mxu0 0
    %277 = vmatpush1.bf16.msra.mxu0 %v253
    %278 = vmatprep.subr.bf16.mxu0 0
    %279 = vmatpush1.bf16.msra.mxu0 0
    %280 = vmatprep.subr.bf16.mxu0 0
    %281 = vmatpush1.bf16.msra.mxu0 0
    %282 = vmatprep.subr.bf16.mxu0 0
    %283 = vmatpush1.bf16.msra.mxu0 0
    %284 = vmatprep.subr.bf16.mxu0 0
    %285 = vmatpush1.bf16.msra.mxu0 0
    %286 = vmatprep.subr.bf16.mxu0 0
    %287 = vmatpush1.bf16.msra.mxu0 0
    %288 = vmatprep.subr.bf16.mxu0 0
    %289 = vmatpush1.bf16.msra.mxu0 0
    %290 = vmatprep.subr.bf16.mxu0 0
    %291 = vmatpush1.bf16.msra.mxu0 0
    %292 = vmatprep.subr.bf16.mxu0 0
    %293 = vmatpush1.bf16.msra.mxu0 0
    %294 = vmatprep.mubr.bf16.mxu0 0
    %295 = vmatmul.mubr.bf16.gmra.mrb[0].mxu0 %v197
    %v296 = vpop.f32.mrb[0].mxu0
    %v297 = vadd.f32 0.0, %v296
    %v298 = vpop.f32.mrb[0].mxu0
    %v299 = vpop.f32.mrb[0].mxu0
    %v300 = vpop.f32.mrb[0].mxu0
    %301 = vdwg.mxu0
    %v302 = vld [vmem:[#allocation9] sm:$0xf]
    %v303 = vld [vmem:[#allocation9 + $0x4] sm:$0xf]
    %v304 = vld [vmem:[#allocation9 + $0x8] sm:$0xf]
    %v305 = vld [vmem:[#allocation9 + $0xc] sm:$0xf]
    %v306 = vld [vmem:[#allocation9 + $0x10] sm:$0xf]
    %v307 = vld [vmem:[#allocation9 + $0x14] sm:$0xf]
    %v308 = vld [vmem:[#allocation9 + $0x18] sm:$0xf]
    %v309 = vld [vmem:[#allocation9 + $0x1c] sm:$0xf]
    %v310 = vld [vmem:[#allocation9 + $0x20] sm:$0xf]
    %v311 = vld [vmem:[#allocation9 + $0x24] sm:$0xf]
    %v312 = vld [vmem:[#allocation9 + $0x28] sm:$0xf]
    %v313 = vld [vmem:[#allocation9 + $0x2c] sm:$0xf]
    %v314 = vld [vmem:[#allocation9 + $0x30] sm:$0xf]
    %v315 = vld [vmem:[#allocation9 + $0x34] sm:$0xf]
    %v316 = vld [vmem:[#allocation9 + $0x38] sm:$0xf]
    %v317 = vld [vmem:[#allocation9 + $0x3c] sm:$0xf]
    %v318 = vld [vmem:[#allocation11] sm:$0xf]
    %v319 = vld [vmem:[#allocation11 + $0x4] sm:$0xf]
    %v320 = vld [vmem:[#allocation11 + $0x8] sm:$0xf]
    %v321 = vld [vmem:[#allocation11 + $0xc] sm:$0xf]
    %v322 = vld [vmem:[#allocation11 + $0x10] sm:$0xf]
    %v323 = vld [vmem:[#allocation11 + $0x14] sm:$0xf]
    %v324 = vld [vmem:[#allocation11 + $0x18] sm:$0xf]
    %v325 = vld [vmem:[#allocation11 + $0x1c] sm:$0xf]
    %v326 = vld [vmem:[#allocation11 + $0x20] sm:$0xf]
    %v327 = vld [vmem:[#allocation11 + $0x24] sm:$0xf]
    %v328 = vld [vmem:[#allocation11 + $0x28] sm:$0xf]
    %v329 = vld [vmem:[#allocation11 + $0x2c] sm:$0xf]
    %v330 = vld [vmem:[#allocation11 + $0x30] sm:$0xf]
    %v331 = vld [vmem:[#allocation11 + $0x34] sm:$0xf]
    %v332 = vld [vmem:[#allocation11 + $0x38] sm:$0xf]
    %v333 = vld [vmem:[#allocation11 + $0x3c] sm:$0xf]
    %v350 = vunpack.c.l.b16 %v302
    %v351 = vunpack.c.l.b16 %v303
    %v352 = vunpack.c.l.b16 %v304
    %v353 = vunpack.c.l.b16 %v305
    %v354 = vunpack.c.l.b16 %v306
    %v355 = vunpack.c.l.b16 %v307
    %v356 = vunpack.c.l.b16 %v308
    %v357 = vunpack.c.l.b16 %v309
    %v358 = vunpack.c.l.b16 %v310
    %v359 = vunpack.c.l.b16 %v311
    %v360 = vunpack.c.l.b16 %v312
    %v361 = vunpack.c.l.b16 %v313
    %v362 = vunpack.c.l.b16 %v314
    %v363 = vunpack.c.l.b16 %v315
    %v364 = vunpack.c.l.b16 %v316
    %v365 = vunpack.c.l.b16 %v317
    %v366 = vpack.c.b16 %v351, %v350
    %v367 = vpack.c.b16 %v353, %v352
    %v368 = vpack.c.b16 %v355, %v354
    %v369 = vpack.c.b16 %v357, %v356
    %v370 = vpack.c.b16 %v359, %v358
    %v371 = vpack.c.b16 %v361, %v360
    %v372 = vpack.c.b16 %v363, %v362
    %v373 = vpack.c.b16 %v365, %v364
    %v398 = vunpack.c.l.b16 %v318
    %v399 = vunpack.c.l.b16 %v319
    %v400 = vunpack.c.l.b16 %v320
    %v401 = vunpack.c.l.b16 %v321
    %v402 = vunpack.c.l.b16 %v322
    %v403 = vunpack.c.l.b16 %v323
    %v404 = vunpack.c.l.b16 %v324
    %v405 = vunpack.c.l.b16 %v325
    %v406 = vunpack.c.l.b16 %v326
    %v407 = vunpack.c.l.b16 %v327
    %v408 = vunpack.c.l.b16 %v328
    %v409 = vunpack.c.l.b16 %v329
    %v410 = vunpack.c.l.b16 %v330
    %v411 = vunpack.c.l.b16 %v331
    %v412 = vunpack.c.l.b16 %v332
    %v413 = vunpack.c.l.b16 %v333
    %v414 = vpack.c.b16 %v399, %v398
    %v415 = vpack.c.b16 %v401, %v400
    %v416 = vpack.c.b16 %v403, %v402
    %v417 = vpack.c.b16 %v405, %v404
    %v418 = vpack.c.b16 %v407, %v406
    %v419 = vpack.c.b16 %v409, %v408
    %v420 = vpack.c.b16 %v411, %v410
    %v421 = vpack.c.b16 %v413, %v412
    %430 = vmatprep.subr.bf16.mxu0 0
    %431 = vmatpush1.bf16.msra.mxu0 %v414
    %432 = vmatprep.subr.bf16.mxu0 0
    %433 = vmatpush1.bf16.msra.mxu0 %v415
    %434 = vmatprep.subr.bf16.mxu0 0
    %435 = vmatpush1.bf16.msra.mxu0 %v416
    %436 = vmatprep.subr.bf16.mxu0 0
    %437 = vmatpush1.bf16.msra.mxu0 %v417
    %438 = vmatprep.subr.bf16.mxu0 0
    %439 = vmatpush1.bf16.msra.mxu0 %v418
    %440 = vmatprep.subr.bf16.mxu0 0
    %441 = vmatpush1.bf16.msra.mxu0 %v419
    %442 = vmatprep.subr.bf16.mxu0 0
    %443 = vmatpush1.bf16.msra.mxu0 %v420
    %444 = vmatprep.subr.bf16.mxu0 0
    %445 = vmatpush1.bf16.msra.mxu0 %v421
    %446 = vmatprep.subr.bf16.mxu0 0
    %447 = vmatpush1.bf16.msra.mxu0 0
    %448 = vmatprep.subr.bf16.mxu0 0
    %449 = vmatpush1.bf16.msra.mxu0 0
    %450 = vmatprep.subr.bf16.mxu0 0
    %451 = vmatpush1.bf16.msra.mxu0 0
    %452 = vmatprep.subr.bf16.mxu0 0
    %453 = vmatpush1.bf16.msra.mxu0 0
    %454 = vmatprep.subr.bf16.mxu0 0
    %455 = vmatpush1.bf16.msra.mxu0 0
    %456 = vmatprep.subr.bf16.mxu0 0
    %457 = vmatpush1.bf16.msra.mxu0 0
    %458 = vmatprep.subr.bf16.mxu0 0
    %459 = vmatpush1.bf16.msra.mxu0 0
    %460 = vmatprep.subr.bf16.mxu0 0
    %461 = vmatpush1.bf16.msra.mxu0 0
    %462 = vmatprep.mubr.bf16.mxu0 0
    %463 = vmatmul.mubr.bf16.gmra.mrb[0].mxu0 %v366
    %v464 = vpop.f32.mrb[0].mxu0
    %v465 = vadd.f32 0.0, %v464
    %v466 = vpop.f32.mrb[0].mxu0
    %v467 = vpop.f32.mrb[0].mxu0
    %v468 = vadd.f32 0.0, %v467
    %v469 = vpop.f32.mrb[0].mxu0
    %470 = vmatprep.mubr.bf16.mxu0 0
    %471 = vmatmul.mubr.bf16.gmra.mrb[0].mxu0 %v367
    %v472 = vpop.f32.mrb[0].mxu0
    %v473 = vadd.f32 0.0, %v472
    %v474 = vpop.f32.mrb[0].mxu0
    %v475 = vpop.f32.mrb[0].mxu0
    %v476 = vadd.f32 0.0, %v475
    %v477 = vpop.f32.mrb[0].mxu0
    %478 = vmatprep.mubr.bf16.mxu0 0
    %479 = vmatmul.mubr.bf16.gmra.mrb[0].mxu0 %v368
    %v480 = vpop.f32.mrb[0].mxu0
    %v481 = vadd.f32 0.0, %v480
    %v482 = vpop.f32.mrb[0].mxu0
    %v483 = vpop.f32.mrb[0].mxu0
    %v484 = vadd.f32 0.0, %v483
    %v485 = vpop.f32.mrb[0].mxu0
    %486 = vmatprep.mubr.bf16.mxu0 0
    %487 = vmatmul.mubr.bf16.gmra.mrb[0].mxu0 %v369
    %v488 = vpop.f32.mrb[0].mxu0
    %v489 = vadd.f32 0.0, %v488
    %v490 = vpop.f32.mrb[0].mxu0
    %v491 = vpop.f32.mrb[0].mxu0
    %v492 = vadd.f32 0.0, %v491
    %v493 = vpop.f32.mrb[0].mxu0
    %494 = vmatprep.mubr.bf16.mxu0 0
    %495 = vmatmul.mubr.bf16.gmra.mrb[0].mxu0 %v370
    %v496 = vpop.f32.mrb[0].mxu0
    %v497 = vadd.f32 0.0, %v496
    %v498 = vpop.f32.mrb[0].mxu0
    %v499 = vpop.f32.mrb[0].mxu0
    %v500 = vadd.f32 0.0, %v499
    %v501 = vpop.f32.mrb[0].mxu0
    %502 = vmatprep.mubr.bf16.mxu0 0
    %503 = vmatmul.mubr.bf16.gmra.mrb[0].mxu0 %v371
    %v504 = vpop.f32.mrb[0].mxu0
    %v505 = vadd.f32 0.0, %v504
    %v506 = vpop.f32.mrb[0].mxu0
    %v507 = vpop.f32.mrb[0].mxu0
    %v508 = vadd.f32 0.0, %v507
    %v509 = vpop.f32.mrb[0].mxu0
    %510 = vmatprep.mubr.bf16.mxu0 0
    %511 = vmatmul.mubr.bf16.gmra.mrb[0].mxu0 %v372
    %v512 = vpop.f32.mrb[0].mxu0
    %v513 = vadd.f32 0.0, %v512
    %v514 = vpop.f32.mrb[0].mxu0
    %v515 = vpop.f32.mrb[0].mxu0
    %v516 = vadd.f32 0.0, %v515
    %v517 = vpop.f32.mrb[0].mxu0
    %518 = vmatprep.mubr.bf16.mxu0 0
    %519 = vmatmul.mubr.bf16.gmra.mrb[0].mxu0 %v373
    %v520 = vpop.f32.mrb[0].mxu0
    %v521 = vadd.f32 0.0, %v520
    %v522 = vpop.f32.mrb[0].mxu0
    %v523 = vpop.f32.mrb[0].mxu0
    %v524 = vadd.f32 0.0, %v523
    %v525 = vpop.f32.mrb[0].mxu0
    %526 = vdwg.mxu0
    %v527 = vmul.f32 %v297, %v297
    %528 = vadd.xlane.f32.xlu0 %v527
    %v529 = vpop.xlane.xlu0 %528
    %v530 = vadd.f32 %v529, 1e-12
    %v531 = vrsqrt.pop %v530
    %s532 = sld [smem:[#allocation2]]
    %v533 = vstv %s532
    %v534 = vmul.f32 %v531, %v533
    %v535 = vmul.f32 %v297, %v534
    %v536 = vmul.f32 %v465, %v465
    %v537 = vmul.f32 %v468, %v468
    %v538 = vmul.f32 %v473, %v473
    %v539 = vmul.f32 %v476, %v476
    %v540 = vmul.f32 %v481, %v481
    %v541 = vmul.f32 %v484, %v484
    %v542 = vmul.f32 %v489, %v489
    %v543 = vmul.f32 %v492, %v492
    %v544 = vmul.f32 %v497, %v497
    %v545 = vmul.f32 %v500, %v500
    %v546 = vmul.f32 %v505, %v505
    %v547 = vmul.f32 %v508, %v508
    %v548 = vmul.f32 %v513, %v513
    %v549 = vmul.f32 %v516, %v516
    %v550 = vmul.f32 %v521, %v521
    %v551 = vmul.f32 %v524, %v524
    %v552 = vadd.f32 %v536, %v537
    %v553 = vadd.f32 %v552, %v538
    %v554 = vadd.f32 %v553, %v539
    %v555 = vadd.f32 %v554, %v540
    %v556 = vadd.f32 %v555, %v541
    %v557 = vadd.f32 %v556, %v542
    %v558 = vadd.f32 %v557, %v543
    %v559 = vadd.f32 %v558, %v544
    %v560 = vadd.f32 %v559, %v545
    %v561 = vadd.f32 %v560, %v546
    %v562 = vadd.f32 %v561, %v547
    %v563 = vadd.f32 %v562, %v548
    %v564 = vadd.f32 %v563, %v549
    %v565 = vadd.f32 %v564, %v550
    %v566 = vadd.f32 %v565, %v551
    %v567 = vrot.slane %v566, 4
    %v568 = vadd.f32 %v566, %v567
    %v569 = vrot.slane %v568, 2
    %v570 = vadd.f32 %v568, %v569
    %v571 = vrot.slane %v570, 1
    %v572 = vadd.f32 %v570, %v571
    %v573 = vadd.f32 %v572, 1e-12
    %v574 = vrsqrt.pop %v573
    %v575 = vmul.f32 %v465, %v574
    %v576 = vmul.f32 %v468, %v574
    %v577 = vmul.f32 %v473, %v574
    %v578 = vmul.f32 %v476, %v574
    %v579 = vmul.f32 %v481, %v574
    %v580 = vmul.f32 %v484, %v574
    %v581 = vmul.f32 %v489, %v574
    %v582 = vmul.f32 %v492, %v574
    %v583 = vmul.f32 %v497, %v574
    %v584 = vmul.f32 %v500, %v574
    %v585 = vmul.f32 %v505, %v574
    %v586 = vmul.f32 %v508, %v574
    %v587 = vmul.f32 %v513, %v574
    %v588 = vmul.f32 %v516, %v574
    %v589 = vmul.f32 %v521, %v574
    %v590 = vmul.f32 %v524, %v574
    %v591 = vpack.c.bf16 %v535, %v535
    %v592 = vpack.c.bf16 %v576, %v575
    %v593 = vpack.c.bf16 %v578, %v577
    %v594 = vpack.c.bf16 %v580, %v579
    %v595 = vpack.c.bf16 %v582, %v581
    %v596 = vpack.c.bf16 %v584, %v583
    %v597 = vpack.c.bf16 %v586, %v585
    %v598 = vpack.c.bf16 %v588, %v587
    %v599 = vpack.c.bf16 %v590, %v589
    %600 = vmatprep.subr.bf16.mxu0 0
    %601 = vmatpush1.bf16.msra.mxu0 %v592
    %602 = vmatprep.subr.bf16.mxu0 0
    %603 = vmatpush1.bf16.msra.mxu0 %v593
    %604 = vmatprep.subr.bf16.mxu0 0
    %605 = vmatpush1.bf16.msra.mxu0 %v594
    %606 = vmatprep.subr.bf16.mxu0 0
    %607 = vmatpush1.bf16.msra.mxu0 %v595
    %608 = vmatprep.subr.bf16.mxu0 0
    %609 = vmatpush1.bf16.msra.mxu0 %v596
    %610 = vmatprep.subr.bf16.mxu0 0
    %611 = vmatpush1.bf16.msra.mxu0 %v597
    %612 = vmatprep.subr.bf16.mxu0 0
    %613 = vmatpush1.bf16.msra.mxu0 %v598
    %614 = vmatprep.subr.bf16.mxu0 0
    %615 = vmatpush1.bf16.msra.mxu0 %v599
    %616 = vmatprep.subr.bf16.mxu0 0
    %617 = vmatpush1.bf16.msra.mxu0 0
    %618 = vmatprep.subr.bf16.mxu0 0
    %619 = vmatpush1.bf16.msra.mxu0 0
    %620 = vmatprep.subr.bf16.mxu0 0
    %621 = vmatpush1.bf16.msra.mxu0 0
    %622 = vmatprep.subr.bf16.mxu0 0
    %623 = vmatpush1.bf16.msra.mxu0 0
    %624 = vmatprep.subr.bf16.mxu0 0
    %625 = vmatpush1.bf16.msra.mxu0 0
    %626 = vmatprep.subr.bf16.mxu0 0
    %627 = vmatpush1.bf16.msra.mxu0 0
    %628 = vmatprep.subr.bf16.mxu0 0
    %629 = vmatpush1.bf16.msra.mxu0 0
    %630 = vmatprep.subr.bf16.mxu0 0
    %631 = vmatpush1.bf16.msra.mxu0 0
    %632 = vmatprep.mubr.bf16.mxu0 0
    %633 = vmatmul.mubr.bf16.gmra.mrb[0].mxu0 %v591
    %v634 = vpop.f32.mrb[0].mxu0
    %v635 = vadd.f32 0.0, %v634
    %v636 = vpop.f32.mrb[0].mxu0
    %v637 = vpop.f32.mrb[0].mxu0
    %v638 = vpop.f32.mrb[0].mxu0
    %639 = vdwg.mxu0
    %640 = vst [vmem:[#allocation12] sm:$0xff] %v635
    // Predicated region
    $region46: #{tpu_custom_call.1} parent=1 // pred_check
      _
    $region47: #{tpu_custom_call.1} parent=1 // pred_check_branch
      %642 = sbr.rel (0) target = $region49
    $region48: #{tpu_custom_call.1} parent=1 // pred_region
      %s644 = ssub.s32 128, 128
      %645 = vsyncadd [#allocation5], %s644
      %s647 = sshll.u32 [#allocation12], 4
      %s648 = int_to_ptr.vmem [resolvable:$true] %s647
      %650 = dma.vmem_to_hbm [thread:$0]  %s648, 128, %s6, [#allocation5]
    $region49: #{tpu_custom_call.1} parent=1 // pred_fallthru
      _
    // Predicated region
    $region50: #{tpu_custom_call.1} parent=1 // pred_check
      _
    $region51: #{tpu_custom_call.1} parent=1 // pred_check_branch
      %652 = sbr.rel (0) target = $region53
    $region52: #{tpu_custom_call.1} parent=1 // pred_region
      %653 = dma.done [#allocation5], 128
    $region53: #{tpu_custom_call.1} parent=1 // pred_fallthru
      _
    %654 = vsyncpa [#allocation4], 1
    %655 = vsyncpa [#allocation7], 1
    %656 = vsyncpa [#allocation10], 1
    %657 = vsyncpa [#allocation5], 1

</llo_original>
